<compile_context>
chip_gen: v7x
topology: tpu7x:2x2x1
jax: 0.10.0
libtpu: 0.0.40
codegen_flags: <defaults>
</compile_context>

<pallas_src>
import functools
import math

import jax
import jax.numpy as jnp
from jax.experimental import pallas as pl
from jax.experimental.pallas import tpu as pltpu


def _splitmix32(x):
    """Cheap counter-based hash (uint32 -> uint32), VPU-only integer ops."""
    x = x ^ (x >> 16)
    x = x * jnp.uint32(0x7FEB352D)
    x = x ^ (x >> 15)
    x = x * jnp.uint32(0x846CA68B)
    x = x ^ (x >> 16)
    return x


def graph_mlp_kernel(seed_ref, x_ref, w1_ref, b1_ref, w2_ref, b2_ref, o_ref,
                     *, dropout_p):
    # fc1 + ReLU (f32 accumulation on the MXU, no explicit upcast of x).
    h = jnp.dot(x_ref[...], w1_ref[...],
                preferred_element_type=jnp.float32) + b1_ref[...]
    h = jnp.maximum(h, 0.0)

    # Inverted dropout (training semantics), deterministic given the seed.
    # Mask comes from a counter-based hash of the global element index so it
    # is identical regardless of tiling and needs no hardware PRNG primitive.
    if dropout_p > 0.0:
        rows, cols = h.shape
        row_ids = (jax.lax.broadcasted_iota(jnp.int32, (rows, cols), 0)
                   + pl.program_id(0) * rows)
        col_ids = jax.lax.broadcasted_iota(jnp.int32, (rows, cols), 1)
        idx = (row_ids * cols + col_ids).astype(jnp.uint32)
        seed = seed_ref[0].astype(jnp.uint32) * jnp.uint32(0x9E3779B9)
        bits = _splitmix32(idx ^ seed)
        # 23-bit uniform in [0, 1).
        u = ((bits >> 9).astype(jnp.int32).astype(jnp.float32)
             * jnp.float32(1.0 / float(1 << 23)))
        keep = (u >= jnp.float32(dropout_p)).astype(jnp.float32)
        h = h * (keep * jnp.float32(1.0 / (1.0 - dropout_p)))

    # residual: h + fc2(h)
    out = h + jnp.dot(h, w2_ref[...],
                      preferred_element_type=jnp.float32) + b2_ref[...]
    o_ref[...] = out.astype(o_ref.dtype)


def graph_mlp(x, w1, b1, w2, b2, seed, *, dropout_p=0.2, tile_m=512,
              lane_pack=True):
    """x: (..., input_dim). Returns (..., hidden_dim)."""
    assert 0.0 <= dropout_p < 1.0, "dropout_p must be in [0, 1)"
    *lead, d_in = x.shape
    hidden = w1.shape[1]
    n = math.prod(lead)
    x2d = x.reshape(n, d_in)

    # Lane-dense packing: present a 128-wide output to the store path by
    # folding `pack` consecutive rows into one packed row and using
    # block-diagonal weights.  Math is unchanged.
    pack = 1
    if (lane_pack and hidden < 128 and 128 % hidden == 0
            and n % (128 // hidden) == 0):
        pack = 128 // hidden

    if pack > 1:
        x2d = x2d.reshape(n // pack, pack * d_in)
        eye1 = jnp.eye(pack, dtype=w1.dtype)
        eye2 = jnp.eye(pack, dtype=w2.dtype)
        w1 = jnp.kron(eye1, w1)          # (pack*d_in, pack*hidden)
        w2 = jnp.kron(eye2, w2)          # (pack*hidden, pack*hidden)
        b1 = jnp.tile(b1, (1, pack))     # (1, pack*hidden)
        b2 = jnp.tile(b2, (1, pack))

    n_rows, dp_in = x2d.shape
    hp = hidden * pack

    # Row tile: as big as available (mem-bound kernel, per-step overhead
    # dominates small tiles).  VMEM use per step is tiny at these widths.
    tile = min(tile_m, n_rows)
    if n_rows % tile != 0:
        tile = math.gcd(tile, n_rows)
    assert n_rows % tile == 0
    assert tile == n_rows or tile % 8 == 0, \
        "row tile must be a multiple of 8 or the full extent"

    kernel = functools.partial(graph_mlp_kernel, dropout_p=float(dropout_p))

    out = pl.pallas_call(
        kernel,
        out_shape=jax.ShapeDtypeStruct((n_rows, hp), x.dtype),
        grid_spec=pltpu.PrefetchScalarGridSpec(
            num_scalar_prefetch=1,                       # seed lands in SMEM
            grid=(n_rows // tile,),
            in_specs=[
                pl.BlockSpec((tile, dp_in), lambda i, seed: (i, 0)),
                pl.BlockSpec((dp_in, hp),   lambda i, seed: (0, 0)),
                pl.BlockSpec((1, hp),       lambda i, seed: (0, 0)),
                pl.BlockSpec((hp, hp),      lambda i, seed: (0, 0)),
                pl.BlockSpec((1, hp),       lambda i, seed: (0, 0)),
            ],
            out_specs=pl.BlockSpec((tile, hp), lambda i, seed: (i, 0)),
        ),
        compiler_params=pltpu.CompilerParams(
            # Each row tile is independent (mask depends only on global
            # element index), so the grid can be sharded across TCs on v7x.
            dimension_semantics=("parallel",),
        ),
    )(seed, x2d, w1, b1, w2, b2)

    return out.reshape(*lead, hidden)


def _init_linear(key, fan_in, fan_out):
    # Mimic torch.nn.Linear default init: U(-1/sqrt(fan_in), 1/sqrt(fan_in)).
    kw, kb = jax.random.split(key)
    bound = 1.0 / (fan_in ** 0.5)
    w = jax.random.uniform(kw, (fan_in, fan_out), jnp.float32, -bound, bound)
    b = jax.random.uniform(kb, (1, fan_out), jnp.float32, -bound, bound)
    return w, b


if __name__ == "__main__":
    key = jax.random.PRNGKey(0)
    k_x, k_fc1, k_fc2 = jax.random.split(key, 3)

    batch, num_nodes = 2, 64
    input_dim, hidden_dim = 16, 32

    # x in "graph" layout (batch, nodes, features).
    x = jax.random.normal(k_x, (batch, num_nodes, input_dim), jnp.float32)
    w1, b1 = _init_linear(k_fc1, input_dim, hidden_dim)
    w2, b2 = _init_linear(k_fc2, hidden_dim, hidden_dim)
    seed = jnp.array([1234], dtype=jnp.int32)

    # 1) Correctness: dropout disabled -> must match the pure-JAX reference.
    out_eval = graph_mlp(x, w1, b1, w2, b2, seed, dropout_p=0.0)
    jax.block_until_ready(out_eval)

    x2d = x.reshape(-1, input_dim)
    h_ref = jnp.maximum(x2d @ w1 + b1, 0.0)
    ref = (h_ref + h_ref @ w2 + b2).reshape(batch, num_nodes, hidden_dim)
    assert out_eval.shape == ref.shape
    max_err = float(jnp.max(jnp.abs(out_eval - ref)))
    assert jnp.allclose(out_eval, ref, rtol=1e-2, atol=1e-2), max_err

    # 2) Training path: dropout on, deterministic given the seed.
    out_train = graph_mlp(x, w1, b1, w2, b2, seed, dropout_p=0.2)
    jax.block_until_ready(out_train)
    assert out_train.shape == (batch, num_nodes, hidden_dim)
    assert bool(jnp.all(jnp.isfinite(out_train)))

    print("KERNEL_OK")
</pallas_src>

<mosaic_0001>
module attributes {stable_mosaic.version = 11 : i64} {
  func.func @graph_mlp_kernel(%arg0: i32, %arg1: memref<1xi32, #tpu.memory_space<smem>>, %arg2: memref<32x64xf32, #tpu.memory_space<vmem>>, %arg3: memref<64x128xf32, #tpu.memory_space<vmem>>, %arg4: memref<1x128xf32, #tpu.memory_space<vmem>>, %arg5: memref<128x128xf32, #tpu.memory_space<vmem>>, %arg6: memref<1x128xf32, #tpu.memory_space<vmem>>, %arg7: memref<32x128xf32, #tpu.memory_space<vmem>>) attributes {dimension_semantics = [#tpu.dimension_semantics<parallel>], iteration_bounds = array<i64: 1>, scalar_prefetch = 1 : i64, scratch_operands = 0 : i64, tpu.core_type = #tpu.core_type<tc>, window_params = [{transform_indices = @transform_0, window_bounds = array<i64: 32, 64>}, {pipeline_mode = #tpu.pipeline_mode<synchronous>, transform_indices = @transform_1, window_bounds = array<i64: 64, 128>}, {pipeline_mode = #tpu.pipeline_mode<synchronous>, transform_indices = @transform_2, window_bounds = array<i64: 1, 128>}, {pipeline_mode = #tpu.pipeline_mode<synchronous>, transform_indices = @transform_3, window_bounds = array<i64: 128, 128>}, {pipeline_mode = #tpu.pipeline_mode<synchronous>, transform_indices = @transform_4, window_bounds = array<i64: 1, 128>}, {transform_indices = @transform_5, window_bounds = array<i64: 32, 128>}]} {
    %c0 = arith.constant 0 : index
    %c0_0 = arith.constant 0 : index
    %0 = vector.load %arg2[%c0, %c0_0] : memref<32x64xf32, #tpu.memory_space<vmem>>, vector<32x64xf32>
    %c0_1 = arith.constant 0 : index
    %c0_2 = arith.constant 0 : index
    %1 = vector.load %arg3[%c0_1, %c0_2] : memref<64x128xf32, #tpu.memory_space<vmem>>, vector<64x128xf32>
    %cst = arith.constant dense<0.000000e+00> : vector<32x128xf32>
    %2 = tpu.matmul %0, %1, %cst {dimension_numbers = #tpu.dot_dimension_numbers<[1], [0], [0], [1], [0, 0, 1, 1], [], []>} : vector<32x64xf32>, vector<64x128xf32>, vector<32x128xf32> -> vector<32x128xf32>
    %c0_3 = arith.constant 0 : index
    %c0_4 = arith.constant 0 : index
    %3 = vector.load %arg4[%c0_3, %c0_4] : memref<1x128xf32, #tpu.memory_space<vmem>>, vector<1x128xf32>
    %4 = vector.broadcast %3 : vector<1x128xf32> to vector<32x128xf32>
    %5 = arith.addf %2, %4 : vector<32x128xf32>
    %cst_5 = arith.constant 0.000000e+00 : f32
    %6 = vector.broadcast %cst_5 : f32 to vector<32x128xf32>
    %7 = arith.maximumf %5, %6 : vector<32x128xf32>
    %c0_6 = arith.constant 0 : index
    %c0_7 = arith.constant 0 : index
    %8 = vector.load %arg5[%c0_6, %c0_7] : memref<128x128xf32, #tpu.memory_space<vmem>>, vector<128x128xf32>
    %cst_8 = arith.constant dense<0.000000e+00> : vector<32x128xf32>
    %9 = tpu.matmul %7, %8, %cst_8 {dimension_numbers = #tpu.dot_dimension_numbers<[1], [0], [0], [1], [0, 0, 1, 1], [], []>} : vector<32x128xf32>, vector<128x128xf32>, vector<32x128xf32> -> vector<32x128xf32>
    %10 = arith.addf %7, %9 : vector<32x128xf32>
    %c0_9 = arith.constant 0 : index
    %c0_10 = arith.constant 0 : index
    %11 = vector.load %arg6[%c0_9, %c0_10] : memref<1x128xf32, #tpu.memory_space<vmem>>, vector<1x128xf32>
    %12 = vector.broadcast %11 : vector<1x128xf32> to vector<32x128xf32>
    %13 = arith.addf %10, %12 : vector<32x128xf32>
    %c0_11 = arith.constant 0 : index
    %c0_12 = arith.constant 0 : index
    %14 = vector.load %arg7[%c0_11, %c0_12] : memref<32x128xf32, #tpu.memory_space<vmem>>, vector<32x128xf32>
    tpu.vector_store %arg7[%c0_11, %c0_12], %13 {strides = array<i32>} : memref<32x128xf32, #tpu.memory_space<vmem>>, vector<32x128xf32>,
    return
  }
  func.func @transform_0(%arg0: i32, %arg1: memref<1xi32, #tpu.memory_space<smem>>) -> (i32, i32) {
    %c0_i32 = arith.constant 0 : i32
    %c0_i32_0 = arith.constant 0 : i32
    return %arg0, %c0_i32 : i32, i32
  }
  func.func @transform_1(%arg0: i32, %arg1: memref<1xi32, #tpu.memory_space<smem>>) -> (i32, i32) {
    %c0_i32 = arith.constant 0 : i32
    %c0_i32_0 = arith.constant 0 : i32
    %c0_i32_1 = arith.constant 0 : i32
    return %c0_i32, %c0_i32_0 : i32, i32
  }
  func.func @transform_2(%arg0: i32, %arg1: memref<1xi32, #tpu.memory_space<smem>>) -> (i32, i32) {
    %c0_i32 = arith.constant 0 : i32
    %c0_i32_0 = arith.constant 0 : i32
    %c0_i32_1 = arith.constant 0 : i32
    return %c0_i32, %c0_i32_0 : i32, i32
  }
  func.func @transform_3(%arg0: i32, %arg1: memref<1xi32, #tpu.memory_space<smem>>) -> (i32, i32) {
    %c0_i32 = arith.constant 0 : i32
    %c0_i32_0 = arith.constant 0 : i32
    %c0_i32_1 = arith.constant 0 : i32
    return %c0_i32, %c0_i32_0 : i32, i32
  }
  func.func @transform_4(%arg0: i32, %arg1: memref<1xi32, #tpu.memory_space<smem>>) -> (i32, i32) {
    %c0_i32 = arith.constant 0 : i32
    %c0_i32_0 = arith.constant 0 : i32
    %c0_i32_1 = arith.constant 0 : i32
    return %c0_i32, %c0_i32_0 : i32, i32
  }
  func.func @transform_5(%arg0: i32, %arg1: memref<1xi32, #tpu.memory_space<smem>>) -> (i32, i32) {
    %c0_i32 = arith.constant 0 : i32
    %c0_i32_0 = arith.constant 0 : i32
    return %arg0, %c0_i32 : i32, i32
  }
}

</mosaic_0001>

<llo_original>
// kernel: tpu_custom_call.1
$region0: #{tpu_custom_call.1}
  #allocation0 [shape = 'u32[]', space=smem, size = 0x4, offset = 0x4, fixed_abs, tag = 'smem constant byte address 0x4 - core index']
  #allocation1 [shape = 'u32[144,128]{1,0:T(1,128)}', space=vmem, size = 0x12000, scoped, tag = 'internal scratch']
  #allocation2 [shape = 's32[1]{0}', space=sflag, size = 0x4, scoped, tag = 'scoped memory for tpu_custom_call.1']
  #allocation3 [shape = 's32[1]{0:T(128)S(6)}', space=smem, size = 0x200, scoped, tag = 'prefetched SMEM operand 0']
  %s0 = inlined_call_operand.<no memory space> [shape: s32[1], index: 0, kind: input, shape index: {}]
  %s1 = inlined_call_operand.hbm [shape: f32[32,64], index: 1, kind: input, shape index: {}]
  %s2 = inlined_call_operand.hbm [shape: f32[64,128], index: 2, kind: input, shape index: {}]
  %s3 = inlined_call_operand.vmem [shape: f32[1,128], index: 3, kind: input, shape index: {}]
  %s4 = inlined_call_operand.hbm [shape: f32[128,128], index: 4, kind: input, shape index: {}]
  %s5 = inlined_call_operand.vmem [shape: f32[1,128], index: 5, kind: input, shape index: {}]
  %s6 = inlined_call_operand.hbm [shape: f32[32,128], index: 6, kind: output, shape index: {}]
  %s7 = sld [smem:[#allocation0]]
  $region42: #{tpu_custom_call.1} parent=0
    _
  %s9 = ssub.s32 1, %s7
  %s10 = scalar_select 0, %s9, %s7
  %11 = sst [smem:[#allocation3]] %s0
  $region1: #{tpu_custom_call.1} parent=0
    #allocation4 [shape = 'u8[16384]{0}', space=vmem, size = 0x4000, scoped, tag = 'input window, operand 1, single buffered']
    #allocation5 [shape = 's32[1]{0}', space=sflag, size = 0x4, scoped, tag = 'scoped memory for tpu_custom_call.1']
    #allocation6 [shape = 's32[1]{0}', space=sflag, size = 0x4, scoped, tag = 'scoped memory for tpu_custom_call.1']
    #allocation7 [shape = 'u8[32768]{0}', space=vmem, size = 0x8000, scoped, tag = 'input window, operand 2, single buffered']
    #allocation8 [shape = 's32[1]{0}', space=sflag, size = 0x4, scoped, tag = 'scoped memory for tpu_custom_call.1']
    #allocation9 [shape = 'u8[65536]{0}', space=vmem, size = 0x10000, scoped, tag = 'input window, operand 4, single buffered']
    #allocation10 [shape = 'u8[16384]{0}', space=vmem, size = 0x4000, scoped, tag = 'output window, operand 0, single buffered']
    %12 = vsyncpa [#allocation5], 0
    %13 = vsyncpa [#allocation8], 0
    %14 = vsyncpa [#allocation6], 0
    // Predicated region
    $region2: #{tpu_custom_call.1} parent=1 // pred_check
      _
    $region3: #{tpu_custom_call.1} parent=1 // pred_check_branch
      %16 = sbr.rel (0) target = $region5
    $region4: #{tpu_custom_call.1} parent=1 // pred_region
      %s18 = ssub.s32 512, 512
      %19 = vsyncadd [#allocation5], %s18
      %s20 = sshll.u32 [#allocation4], 4
      %s21 = int_to_ptr.vmem [resolvable:$true] %s20
      %26 = dma.hbm_to_vmem [thread:$0]  %s1, 512, %s21, [#allocation5], 128, 128, 8
    $region5: #{tpu_custom_call.1} parent=1 // pred_fallthru
      _
    // Predicated region
    $region6: #{tpu_custom_call.1} parent=1 // pred_check
      _
    $region7: #{tpu_custom_call.1} parent=1 // pred_check_branch
      %28 = sbr.rel (0) target = $region9
    $region8: #{tpu_custom_call.1} parent=1 // pred_region
      %s30 = ssub.s32 1024, 1024
      %31 = vsyncadd [#allocation8], %s30
      %s32 = sshll.u32 [#allocation7], 4
      %s33 = int_to_ptr.vmem [resolvable:$true] %s32
      %38 = dma.hbm_to_vmem [thread:$0]  %s2, 1024, %s33, [#allocation8], 128, 128, 8
    $region9: #{tpu_custom_call.1} parent=1 // pred_fallthru
      _
    // Predicated region
    $region10: #{tpu_custom_call.1} parent=1 // pred_check
      _
    $region11: #{tpu_custom_call.1} parent=1 // pred_check_branch
      %40 = sbr.rel (0) target = $region13
    $region12: #{tpu_custom_call.1} parent=1 // pred_region
      _
    $region13: #{tpu_custom_call.1} parent=1 // pred_fallthru
      _
    // Predicated region
    $region14: #{tpu_custom_call.1} parent=1 // pred_check
      _
    $region15: #{tpu_custom_call.1} parent=1 // pred_check_branch
      %42 = sbr.rel (0) target = $region17
    $region16: #{tpu_custom_call.1} parent=1 // pred_region
      %s44 = ssub.s32 2048, 2048
      %45 = vsyncadd [#allocation8], %s44
      %s46 = sshll.u32 [#allocation9], 4
      %s47 = int_to_ptr.vmem [resolvable:$true] %s46
      %52 = dma.hbm_to_vmem [thread:$0]  %s4, 2048, %s47, [#allocation8], 128, 128, 8
    $region17: #{tpu_custom_call.1} parent=1 // pred_fallthru
      _
    // Predicated region
    $region18: #{tpu_custom_call.1} parent=1 // pred_check
      _
    $region19: #{tpu_custom_call.1} parent=1 // pred_check_branch
      %54 = sbr.rel (0) target = $region21
    $region20: #{tpu_custom_call.1} parent=1 // pred_region
      _
    $region21: #{tpu_custom_call.1} parent=1 // pred_fallthru
      _
    // Predicated region
    $region22: #{tpu_custom_call.1} parent=1 // pred_check
      _
    $region23: #{tpu_custom_call.1} parent=1 // pred_check_branch
      %56 = sbr.rel (0) target = $region25
    $region24: #{tpu_custom_call.1} parent=1 // pred_region
      %57 = dma.done [#allocation5], 512
    $region25: #{tpu_custom_call.1} parent=1 // pred_fallthru
      _
    // Predicated region
    $region26: #{tpu_custom_call.1} parent=1 // pred_check
      _
    $region27: #{tpu_custom_call.1} parent=1 // pred_check_branch
      %59 = sbr.rel (0) target = $region29
    $region28: #{tpu_custom_call.1} parent=1 // pred_region
      %60 = dma.done [#allocation8], 1024
    $region29: #{tpu_custom_call.1} parent=1 // pred_fallthru
      _
    // Predicated region
    $region30: #{tpu_custom_call.1} parent=1 // pred_check
      _
    $region31: #{tpu_custom_call.1} parent=1 // pred_check_branch
      %62 = sbr.rel (0) target = $region33
    $region32: #{tpu_custom_call.1} parent=1 // pred_region
      %63 = dma.done [#allocation8], 2048
    $region33: #{tpu_custom_call.1} parent=1 // pred_fallthru
      _
    %v64 = vld [vmem:[#allocation4] sm:$0xff]
    %v65 = vld [vmem:[#allocation4 + $0x8] sm:$0xff]
    %v66 = vld [vmem:[#allocation4 + $0x10] sm:$0xff]
    %v67 = vld [vmem:[#allocation4 + $0x18] sm:$0xff]
    %v68 = vld [vmem:[#allocation7] sm:$0xff]
    %v69 = vld [vmem:[#allocation7 + $0x8] sm:$0xff]
    %v70 = vld [vmem:[#allocation7 + $0x10] sm:$0xff]
    %v71 = vld [vmem:[#allocation7 + $0x18] sm:$0xff]
    %v72 = vld [vmem:[#allocation7 + $0x20] sm:$0xff]
    %v73 = vld [vmem:[#allocation7 + $0x28] sm:$0xff]
    %v74 = vld [vmem:[#allocation7 + $0x30] sm:$0xff]
    %v75 = vld [vmem:[#allocation7 + $0x38] sm:$0xff]
    %v76 = vld [vmem:[%s3] sm:$0x1]
    %v78 = vlaneseq
    %v79 = vshrl.u32 %v78, 7
    %v80 = vsub.s32 0, %v79
    %v81 = vrot.slane %v76, %v80
    %vm83 = vcmask 523264
    %v85 = vsel %vm83, %v64, 0
    %v88 = vsel %vm83, %v65, 0
    %v91 = vsel %vm83, %v66, 0
    %v94 = vsel %vm83, %v67, 0
    %96 = vmatprep.subr.mxu0 0.0
    %97 = vmatpush1.msra.mxu0 %v68
    %98 = vmatprep.subr.mxu0 0.0
    %99 = vmatpush1.msra.mxu0 %v69
    %100 = vmatprep.subr.mxu0 0.0
    %101 = vmatpush1.msra.mxu0 %v70
    %102 = vmatprep.subr.mxu0 0.0
    %103 = vmatpush1.msra.mxu0 %v71
    %104 = vmatprep.subr.mxu0 0.0
    %105 = vmatpush1.msra.mxu0 %v72
    %106 = vmatprep.subr.mxu0 0.0
    %107 = vmatpush1.msra.mxu0 %v73
    %108 = vmatprep.subr.mxu0 0.0
    %109 = vmatpush1.msra.mxu0 %v74
    %110 = vmatprep.subr.mxu0 0.0
    %111 = vmatpush1.msra.mxu0 %v75
    %112 = vmatprep.subr.mxu0 0.0
    %113 = vmatpush1.msra.mxu0 0.0
    %114 = vmatprep.subr.mxu0 0.0
    %115 = vmatpush1.msra.mxu0 0.0
    %116 = vmatprep.subr.mxu0 0.0
    %117 = vmatpush1.msra.mxu0 0.0
    %118 = vmatprep.subr.mxu0 0.0
    %119 = vmatpush1.msra.mxu0 0.0
    %120 = vmatprep.subr.mxu0 0.0
    %121 = vmatpush1.msra.mxu0 0.0
    %122 = vmatprep.subr.mxu0 0.0
    %123 = vmatpush1.msra.mxu0 0.0
    %124 = vmatprep.subr.mxu0 0.0
    %125 = vmatpush1.msra.mxu0 0.0
    %126 = vmatprep.subr.mxu0 0.0
    %127 = vmatpush1.msra.mxu0 0.0
    %128 = vmatprep.subr.mxu0 0.0
    %129 = vmatpush1.msra.mxu0 0.0
    %130 = vmatprep.subr.mxu0 0.0
    %131 = vmatpush1.msra.mxu0 0.0
    %132 = vmatprep.subr.mxu0 0.0
    %133 = vmatpush1.msra.mxu0 0.0
    %134 = vmatprep.subr.mxu0 0.0
    %135 = vmatpush1.msra.mxu0 0.0
    %136 = vmatprep.subr.mxu0 0.0
    %137 = vmatpush1.msra.mxu0 0.0
    %138 = vmatprep.subr.mxu0 0.0
    %139 = vmatpush1.msra.mxu0 0.0
    %140 = vmatprep.subr.mxu0 0.0
    %141 = vmatpush1.msra.mxu0 0.0
    %142 = vmatprep.subr.mxu0 0.0
    %143 = vmatpush1.msra.mxu0 0.0
    %144 = vmatprep.subr.mxu0 0.0
    %145 = vmatpush1.msra.mxu0 0.0
    %146 = vmatprep.subr.mxu0 0.0
    %147 = vmatpush1.msra.mxu0 0.0
    %148 = vmatprep.subr.mxu0 0.0
    %149 = vmatpush1.msra.mxu0 0.0
    %150 = vmatprep.subr.mxu0 0.0
    %151 = vmatpush1.msra.mxu0 0.0
    %152 = vmatprep.subr.mxu0 0.0
    %153 = vmatpush1.msra.mxu0 0.0
    %154 = vmatprep.subr.mxu0 0.0
    %155 = vmatpush1.msra.mxu0 0.0
    %156 = vmatprep.subr.mxu0 0.0
    %157 = vmatpush1.msra.mxu0 0.0
    %158 = vmatprep.subr.mxu0 0.0
    %159 = vmatpush1.msra.mxu0 0.0
    %160 = vmatprep.mubr.f32.mxu0 0.0
    %161 = vmatmul.mubr.f32.gmra.mrb[0].mxu0 %v85
    %v162 = vpop.f32.mrb[0].mxu0
    %v163 = vadd.f32 %v81, %v162
    %v164 = vpop.f32.mrb[0].mxu0
    %165 = vmatprep.mubr.f32.mxu0 0.0
    %166 = vmatmul.mubr.f32.gmra.mrb[0].mxu0 %v88
    %v167 = vpop.f32.mrb[0].mxu0
    %v168 = vadd.f32 %v81, %v167
    %v169 = vpop.f32.mrb[0].mxu0
    %170 = vmatprep.mubr.f32.mxu0 0.0
    %171 = vmatmul.mubr.f32.gmra.mrb[0].mxu0 %v91
    %v172 = vpop.f32.mrb[0].mxu0
    %v173 = vadd.f32 %v81, %v172
    %v174 = vpop.f32.mrb[0].mxu0
    %175 = vmatprep.mubr.f32.mxu0 0.0
    %176 = vmatmul.mubr.f32.gmra.mrb[0].mxu0 %v94
    %v177 = vpop.f32.mrb[0].mxu0
    %v178 = vadd.f32 %v81, %v177
    %v179 = vpop.f32.mrb[0].mxu0
    %180 = vdwg.mxu0
    %v181 = vmax.f32 %v163, 0.0
    %v182 = vmax.f32 %v168, 0.0
    %v183 = vmax.f32 %v173, 0.0
    %v184 = vmax.f32 %v178, 0.0
    %v185 = vld [vmem:[#allocation9] sm:$0xff]
    %v186 = vld [vmem:[#allocation9 + $0x8] sm:$0xff]
    %v187 = vld [vmem:[#allocation9 + $0x10] sm:$0xff]
    %v188 = vld [vmem:[#allocation9 + $0x18] sm:$0xff]
    %v189 = vld [vmem:[#allocation9 + $0x20] sm:$0xff]
    %v190 = vld [vmem:[#allocation9 + $0x28] sm:$0xff]
    %v191 = vld [vmem:[#allocation9 + $0x30] sm:$0xff]
    %v192 = vld [vmem:[#allocation9 + $0x38] sm:$0xff]
    %v193 = vld [vmem:[#allocation9 + $0x40] sm:$0xff]
    %v194 = vld [vmem:[#allocation9 + $0x48] sm:$0xff]
    %v195 = vld [vmem:[#allocation9 + $0x50] sm:$0xff]
    %v196 = vld [vmem:[#allocation9 + $0x58] sm:$0xff]
    %v197 = vld [vmem:[#allocation9 + $0x60] sm:$0xff]
    %v198 = vld [vmem:[#allocation9 + $0x68] sm:$0xff]
    %v199 = vld [vmem:[#allocation9 + $0x70] sm:$0xff]
    %v200 = vld [vmem:[#allocation9 + $0x78] sm:$0xff]
    %201 = vmatprep.subr.mxu0 0.0
    %202 = vmatpush1.msra.mxu0 %v185
    %203 = vmatprep.subr.mxu0 0.0
    %204 = vmatpush1.msra.mxu0 %v186
    %205 = vmatprep.subr.mxu0 0.0
    %206 = vmatpush1.msra.mxu0 %v187
    %207 = vmatprep.subr.mxu0 0.0
    %208 = vmatpush1.msra.mxu0 %v188
    %209 = vmatprep.subr.mxu0 0.0
    %210 = vmatpush1.msra.mxu0 %v189
    %211 = vmatprep.subr.mxu0 0.0
    %212 = vmatpush1.msra.mxu0 %v190
    %213 = vmatprep.subr.mxu0 0.0
    %214 = vmatpush1.msra.mxu0 %v191
    %215 = vmatprep.subr.mxu0 0.0
    %216 = vmatpush1.msra.mxu0 %v192
    %217 = vmatprep.subr.mxu0 0.0
    %218 = vmatpush1.msra.mxu0 %v193
    %219 = vmatprep.subr.mxu0 0.0
    %220 = vmatpush1.msra.mxu0 %v194
    %221 = vmatprep.subr.mxu0 0.0
    %222 = vmatpush1.msra.mxu0 %v195
    %223 = vmatprep.subr.mxu0 0.0
    %224 = vmatpush1.msra.mxu0 %v196
    %225 = vmatprep.subr.mxu0 0.0
    %226 = vmatpush1.msra.mxu0 %v197
    %227 = vmatprep.subr.mxu0 0.0
    %228 = vmatpush1.msra.mxu0 %v198
    %229 = vmatprep.subr.mxu0 0.0
    %230 = vmatpush1.msra.mxu0 %v199
    %231 = vmatprep.subr.mxu0 0.0
    %232 = vmatpush1.msra.mxu0 %v200
    %233 = vmatprep.subr.mxu0 0.0
    %234 = vmatpush1.msra.mxu0 0.0
    %235 = vmatprep.subr.mxu0 0.0
    %236 = vmatpush1.msra.mxu0 0.0
    %237 = vmatprep.subr.mxu0 0.0
    %238 = vmatpush1.msra.mxu0 0.0
    %239 = vmatprep.subr.mxu0 0.0
    %240 = vmatpush1.msra.mxu0 0.0
    %241 = vmatprep.subr.mxu0 0.0
    %242 = vmatpush1.msra.mxu0 0.0
    %243 = vmatprep.subr.mxu0 0.0
    %244 = vmatpush1.msra.mxu0 0.0
    %245 = vmatprep.subr.mxu0 0.0
    %246 = vmatpush1.msra.mxu0 0.0
    %247 = vmatprep.subr.mxu0 0.0
    %248 = vmatpush1.msra.mxu0 0.0
    %249 = vmatprep.subr.mxu0 0.0
    %250 = vmatpush1.msra.mxu0 0.0
    %251 = vmatprep.subr.mxu0 0.0
    %252 = vmatpush1.msra.mxu0 0.0
    %253 = vmatprep.subr.mxu0 0.0
    %254 = vmatpush1.msra.mxu0 0.0
    %255 = vmatprep.subr.mxu0 0.0
    %256 = vmatpush1.msra.mxu0 0.0
    %257 = vmatprep.subr.mxu0 0.0
    %258 = vmatpush1.msra.mxu0 0.0
    %259 = vmatprep.subr.mxu0 0.0
    %260 = vmatpush1.msra.mxu0 0.0
    %261 = vmatprep.subr.mxu0 0.0
    %262 = vmatpush1.msra.mxu0 0.0
    %263 = vmatprep.subr.mxu0 0.0
    %264 = vmatpush1.msra.mxu0 0.0
    %265 = vmatprep.mubr.f32.mxu0 0.0
    %266 = vmatmul.mubr.f32.gmra.mrb[0].mxu0 %v181
    %v267 = vpop.f32.mrb[0].mxu0
    %v268 = vadd.f32 0.0, %v267
    %v269 = vpop.f32.mrb[0].mxu0
    %270 = vmatprep.mubr.f32.mxu0 0.0
    %271 = vmatmul.mubr.f32.gmra.mrb[0].mxu0 %v182
    %v272 = vpop.f32.mrb[0].mxu0
    %v273 = vadd.f32 0.0, %v272
    %v274 = vpop.f32.mrb[0].mxu0
    %275 = vmatprep.mubr.f32.mxu0 0.0
    %276 = vmatmul.mubr.f32.gmra.mrb[0].mxu0 %v183
    %v277 = vpop.f32.mrb[0].mxu0
    %v278 = vadd.f32 0.0, %v277
    %v279 = vpop.f32.mrb[0].mxu0
    %280 = vmatprep.mubr.f32.mxu0 0.0
    %281 = vmatmul.mubr.f32.gmra.mrb[0].mxu0 %v184
    %v282 = vpop.f32.mrb[0].mxu0
    %v283 = vadd.f32 0.0, %v282
    %v284 = vpop.f32.mrb[0].mxu0
    %285 = vdwg.mxu0
    %v286 = vadd.f32 %v181, %v268
    %v287 = vadd.f32 %v182, %v273
    %v288 = vadd.f32 %v183, %v278
    %v289 = vadd.f32 %v184, %v283
    %v290 = vld [vmem:[%s5] sm:$0x1]
    %v292 = vlaneseq
    %v293 = vshrl.u32 %v292, 7
    %v294 = vsub.s32 0, %v293
    %v295 = vrot.slane %v290, %v294
    %v297 = vadd.f32 %v286, %v295
    %v298 = vadd.f32 %v287, %v295
    %v299 = vadd.f32 %v288, %v295
    %v300 = vadd.f32 %v289, %v295
    %301 = vst [vmem:[#allocation10] sm:$0xff] %v297
    %302 = vst [vmem:[#allocation10 + $0x8] sm:$0xff] %v298
    %303 = vst [vmem:[#allocation10 + $0x10] sm:$0xff] %v299
    %304 = vst [vmem:[#allocation10 + $0x18] sm:$0xff] %v300
    // Predicated region
    $region34: #{tpu_custom_call.1} parent=1 // pred_check
      _
    $region35: #{tpu_custom_call.1} parent=1 // pred_check_branch
      %306 = sbr.rel (0) target = $region37
    $region36: #{tpu_custom_call.1} parent=1 // pred_region
      %s308 = ssub.s32 512, 512
      %309 = vsyncadd [#allocation6], %s308
      %s310 = sshll.u32 [#allocation10], 4
      %s311 = int_to_ptr.vmem [resolvable:$true] %s310
      %316 = dma.vmem_to_hbm [thread:$0]  %s311, 512, %s6, [#allocation6], 128, 128, 8
    $region37: #{tpu_custom_call.1} parent=1 // pred_fallthru
      _
    // Predicated region
    $region38: #{tpu_custom_call.1} parent=1 // pred_check
      _
    $region39: #{tpu_custom_call.1} parent=1 // pred_check_branch
      %318 = sbr.rel (0) target = $region41
    $region40: #{tpu_custom_call.1} parent=1 // pred_region
      %319 = dma.done [#allocation6], 512
    $region41: #{tpu_custom_call.1} parent=1 // pred_fallthru
      _
    %320 = vsyncpa [#allocation5], 1
    %321 = vsyncpa [#allocation8], 1
    %322 = vsyncpa [#allocation6], 1

</llo_original>
